<compile_context>
chip_gen: v5e
topology: v5e:2x2
jax: 0.10.0
libtpu: 0.0.40
codegen_flags: <defaults>
</compile_context>

<pallas_src>
import functools

import jax
import jax.numpy as jnp
import numpy as np
from jax import lax
from jax.experimental import pallas as pl
from jax.experimental.pallas import tpu as pltpu


def _round_up(x, m):
    return ((x + m - 1) // m) * m


def _sublane_rows(b, itemsize):
    """Rows a (b, tk) block really occupies in VMEM (sublane packing)."""
    sub = {4: 8, 2: 16, 1: 32}.get(itemsize, 8)
    return _round_up(b, sub)


def _default_num_parts():
    """2 only on chips with two TensorCores visible to one pallas_call (v7x)."""
    try:
        kind = jax.devices()[0].device_kind.lower()
    except Exception:
        return 1
    return 2 if ("v7" in kind or "tpu7" in kind) else 1


def _sp_gram_kernel(s_ref, t_ref, gs_out, gt_out, *, k_axis, k_steps, tk,
                    d_valid, mask_tail):
    """Accumulate partial Gram matrices (X @ X.T) directly into the outputs."""
    k = pl.program_id(k_axis)

    @pl.when(k == 0)
    def _():
        gs_out[...] = jnp.zeros_like(gs_out)
        gt_out[...] = jnp.zeros_like(gt_out)

    s = s_ref[...]  # native dtype; MXU consumes it directly
    t = t_ref[...]

    if mask_tail:
        # The trailing K tile(s) extend past the true feature dim; zero the
        # tail in-register.  This replaces a wrapper-side jnp.pad (which would
        # rewrite both inputs through HBM).  VPU selects are hidden under DMA.
        flat = k if k_axis == 0 else pl.program_id(0) * k_steps + k
        col0 = flat * tk
        lane = lax.broadcasted_iota(jnp.int32, s.shape, 1)
        valid = (col0 + lane) < d_valid
        s = jnp.where(valid, s, 0)
        t = jnp.where(valid, t, 0)

    # X @ X.T: contract the feature axis of both operands.
    # NOTE: for strict f32 bit-parity one could add precision=HIGHEST here —
    # it is free (the kernel is HBM-bound) — but default matches the JAX ref.
    dn = (((1,), (1,)), ((), ()))
    gs = lax.dot_general(s, s, dn, preferred_element_type=jnp.float32)
    gt = lax.dot_general(t, t, dn, preferred_element_type=jnp.float32)
    gs_out[...] += gs.reshape(gs_out.shape)
    gt_out[...] += gt.reshape(gt_out.shape)


@functools.partial(jax.jit, static_argnames=("num_parts", "stream_dtype"))
def sp_loss(fm_s, fm_t, *, num_parts=None, stream_dtype=None):
    """Pallas implementation of SP.forward(fm_s, fm_t) -> scalar loss.

    stream_dtype: optionally cast inputs (e.g. jnp.bfloat16) before streaming
    to halve HBM traffic; accumulation stays f32.  Off by default so numerics
    match a strict f32 reference.
    """
    B = fm_s.shape[0]
    s2 = fm_s.reshape(B, -1)
    t2 = fm_t.reshape(B, -1)
    D = s2.shape[1]
    assert t2.shape == (B, D), "student/teacher must flatten to same (B, D)"

    if stream_dtype is not None:
        s2 = s2.astype(stream_dtype)
        t2 = t2.astype(stream_dtype)

    if num_parts is None:
        num_parts = _default_num_parts()
    # Splitting a small feature dim across cores is pure overhead.
    num_parts = min(num_parts, D // 512) if D >= 1024 else 1
    num_parts = max(1, num_parts)

    # --- VMEM footprint per column (includes sublane padding, per stream) ---
    its_s = jnp.dtype(s2.dtype).itemsize
    its_t = jnp.dtype(t2.dtype).itemsize
    bytes_per_col = (_sublane_rows(B, its_s) * its_s
                     + _sublane_rows(B, its_t) * its_t)

    # --- K-tile selection ----------------------------------------------------
    # Keep the double-buffered input working set inside a conservative budget
    # (v7x has only 64 MiB of VMEM), target ~4 MiB of input per step
    # (>=512 lanes reaches ~85% of HBM roofline) and >=4 pipeline steps so the
    # DMA/compute pipeline stays full.
    input_budget = 24 << 20
    tk_cap = max(128, (input_budget // (2 * bytes_per_col)) // 128 * 128)
    tk_target = max(512, ((4 << 20) // bytes_per_col) // 128 * 128)

    per_part = pl.cdiv(D, num_parts)
    per_part_128 = _round_up(per_part, 128)
    tk = min(tk_cap, tk_target, per_part_128)
    if per_part >= 4 * 512:  # prefer >=4 steps per part when D is large enough
        tk = min(tk, max(512, _round_up(pl.cdiv(per_part, 4), 128)))
    tk = max(tk, 128)
    k_steps = pl.cdiv(per_part, tk)

    nblk_total = pl.cdiv(D, tk)                 # real K-block count in the array
    mask_tail = (num_parts * k_steps * tk != D)

    # --- VMEM limit (generation-aware: stays well under v7x's 64 MiB) -------
    in_bytes = 2 * tk * bytes_per_col                              # 2 DMA buffers / input
    out_bytes = 2 * 2 * _round_up(B, 8) * _round_up(B, 128) * 4    # 2 f32 outputs, 2 buffers
    vmem_bytes = int(in_bytes + out_bytes + (8 << 20))             # + compiler scratch
    vmem_bytes = int(min(max(vmem_bytes, 16 << 20), 48 << 20))

    kernel = functools.partial(
        _sp_gram_kernel,
        k_axis=(0 if num_parts == 1 else 1),
        k_steps=k_steps, tk=tk, d_valid=D, mask_tail=mask_tail)

    if num_parts == 1:
        grid = (k_steps,)
        in_spec = pl.BlockSpec(
            (B, tk), lambda k: (0, jnp.minimum(k, nblk_total - 1)))
        out_spec = pl.BlockSpec((B, B), lambda k: (0, 0))
        out_shape = (jax.ShapeDtypeStruct((B, B), jnp.float32),) * 2
        dim_sem = ("arbitrary",)
    else:
        grid = (num_parts, k_steps)
        in_spec = pl.BlockSpec(
            (B, tk),
            lambda p, k: (0, jnp.minimum(p * k_steps + k, nblk_total - 1)))
        out_spec = pl.BlockSpec((1, B, B), lambda p, k: (p, 0, 0))
        out_shape = (jax.ShapeDtypeStruct((num_parts, B, B), jnp.float32),) * 2
        # CORE_PARALLEL so v7x's two TensorCores each stream half of D.
        dim_sem = (pltpu.CORE_PARALLEL, pltpu.ARBITRARY)

    gs_raw, gt_raw = pl.pallas_call(
        kernel,
        out_shape=out_shape,
        grid_spec=pltpu.PrefetchScalarGridSpec(
            num_scalar_prefetch=0,
            grid=grid,
            in_specs=[in_spec, in_spec],
            out_specs=[out_spec, out_spec],
        ),
        compiler_params=pltpu.CompilerParams(
            dimension_semantics=dim_sem,
            vmem_limit_bytes=vmem_bytes,
        ),
    )(s2, t2)

    # Tiny (B, B) epilogue in plain JAX: sum core-partials, normalize, MSE.
    gs = gs_raw if num_parts == 1 else jnp.sum(gs_raw, axis=0)
    gt = gt_raw if num_parts == 1 else jnp.sum(gt_raw, axis=0)
    eps = jnp.float32(1e-12)  # F.normalize default eps
    ns = gs / jnp.maximum(jnp.sqrt(jnp.sum(gs * gs, axis=1, keepdims=True)), eps)
    nt = gt / jnp.maximum(jnp.sqrt(jnp.sum(gt * gt, axis=1, keepdims=True)), eps)
    diff = ns - nt
    return jnp.mean(diff * diff)


def _sp_loss_ref(fm_s, fm_t):
    """Pure-JAX reference mirroring the PyTorch module."""
    eps = 1e-12
    B = fm_s.shape[0]
    s = fm_s.reshape(B, -1).astype(jnp.float32)
    t = fm_t.reshape(B, -1).astype(jnp.float32)
    gs = s @ s.T
    gt = t @ t.T
    ns = gs / jnp.maximum(jnp.linalg.norm(gs, axis=1, keepdims=True), eps)
    nt = gt / jnp.maximum(jnp.linalg.norm(gt, axis=1, keepdims=True), eps)
    return jnp.mean((ns - nt) ** 2)


if __name__ == "__main__":
    key = jax.random.PRNGKey(0)
    k_s, k_t = jax.random.split(key)

    # NCHW feature maps: batch=2, channels=4, spatial=16x16 -> D = 1024
    fm_s = jax.random.normal(k_s, (2, 4, 16, 16), dtype=jnp.float32)
    fm_t = jax.random.normal(k_t, (2, 4, 16, 16), dtype=jnp.float32)

    loss = jax.block_until_ready(sp_loss(fm_s, fm_t))
    ref = jax.block_until_ready(_sp_loss_ref(fm_s, fm_t))
    np.testing.assert_allclose(np.asarray(loss), np.asarray(ref),
                               rtol=1e-5, atol=1e-6)

    # D that is NOT a multiple of 128 / tk -> exercises the in-kernel tail
    # masking path (no wrapper-side padding).
    fm_s2 = jax.random.normal(k_s, (4, 3, 15, 17), dtype=jnp.float32)
    fm_t2 = jax.random.normal(k_t, (4, 3, 15, 17), dtype=jnp.float32)
    loss2 = jax.block_until_ready(sp_loss(fm_s2, fm_t2))
    ref2 = jax.block_until_ready(_sp_loss_ref(fm_s2, fm_t2))
    np.testing.assert_allclose(np.asarray(loss2), np.asarray(ref2),
                               rtol=1e-5, atol=1e-6)

    print("KERNEL_OK")
</pallas_src>

<mosaic_0001>
module attributes {stable_mosaic.version = 11 : i64} {
  func.func @_sp_gram_kernel(%arg0: i32, %arg1: memref<2x1024xf32, #tpu.memory_space<vmem>>, %arg2: memref<2x1024xf32, #tpu.memory_space<vmem>>, %arg3: memref<2x2xf32, #tpu.memory_space<vmem>>, %arg4: memref<2x2xf32, #tpu.memory_space<vmem>>) attributes {dimension_semantics = [#tpu.dimension_semantics<arbitrary>], iteration_bounds = array<i64: 1>, scalar_prefetch = 0 : i64, scratch_operands = 0 : i64, tpu.core_type = #tpu.core_type<tc>, window_params = [{transform_indices = @transform_0, window_bounds = array<i64: 2, 1024>}, {transform_indices = @transform_1, window_bounds = array<i64: 2, 1024>}, {pipeline_mode = #tpu.pipeline_mode<synchronous>, transform_indices = @transform_2, window_bounds = array<i64: 2, 2>}, {pipeline_mode = #tpu.pipeline_mode<synchronous>, transform_indices = @transform_3, window_bounds = array<i64: 2, 2>}]} {
    %c0_i32 = arith.constant 0 : i32
    %0 = arith.cmpi eq, %arg0, %c0_i32 : i32
    %1 = arith.extui %0 : i1 to i32
    %c0_i32_0 = arith.constant 0 : i32
    %2 = arith.cmpi ne, %1, %c0_i32_0 : i32
    scf.if %2 {
      %cst_13 = arith.constant 0.000000e+00 : f32
      %13 = vector.broadcast %cst_13 : f32 to vector<2x2xf32>
      %c0_14 = arith.constant 0 : index
      %c0_15 = arith.constant 0 : index
      %14 = vector.load %arg3[%c0_14, %c0_15] : memref<2x2xf32, #tpu.memory_space<vmem>>, vector<2x2xf32>
      tpu.vector_store %arg3[%c0_14, %c0_15], %13 {strides = array<i32>} : memref<2x2xf32, #tpu.memory_space<vmem>>, vector<2x2xf32>,
      %cst_16 = arith.constant 0.000000e+00 : f32
      %15 = vector.broadcast %cst_16 : f32 to vector<2x2xf32>
      %c0_17 = arith.constant 0 : index
      %c0_18 = arith.constant 0 : index
      %16 = vector.load %arg4[%c0_17, %c0_18] : memref<2x2xf32, #tpu.memory_space<vmem>>, vector<2x2xf32>
      tpu.vector_store %arg4[%c0_17, %c0_18], %15 {strides = array<i32>} : memref<2x2xf32, #tpu.memory_space<vmem>>, vector<2x2xf32>,
    } else {
    }
    %c0 = arith.constant 0 : index
    %c0_1 = arith.constant 0 : index
    %3 = vector.load %arg1[%c0, %c0_1] : memref<2x1024xf32, #tpu.memory_space<vmem>>, vector<2x1024xf32>
    %c0_2 = arith.constant 0 : index
    %c0_3 = arith.constant 0 : index
    %4 = vector.load %arg2[%c0_2, %c0_3] : memref<2x1024xf32, #tpu.memory_space<vmem>>, vector<2x1024xf32>
    %cst = arith.constant dense<0.000000e+00> : vector<2x2xf32>
    %5 = tpu.matmul %3, %3, %cst {dimension_numbers = #tpu.dot_dimension_numbers<[1], [1], [0], [0], [0, 0, 1, 0], [], []>} : vector<2x1024xf32>, vector<2x1024xf32>, vector<2x2xf32> -> vector<2x2xf32>
    %cst_4 = arith.constant dense<0.000000e+00> : vector<2x2xf32>
    %6 = tpu.matmul %4, %4, %cst_4 {dimension_numbers = #tpu.dot_dimension_numbers<[1], [1], [0], [0], [0, 0, 1, 0], [], []>} : vector<2x1024xf32>, vector<2x1024xf32>, vector<2x2xf32> -> vector<2x2xf32>
    %c0_5 = arith.constant 0 : index
    %c0_6 = arith.constant 0 : index
    %7 = vector.load %arg3[%c0_5, %c0_6] : memref<2x2xf32, #tpu.memory_space<vmem>>, vector<2x2xf32>
    %8 = arith.addf %7, %5 : vector<2x2xf32>
    %c0_7 = arith.constant 0 : index
    %c0_8 = arith.constant 0 : index
    %9 = vector.load %arg3[%c0_7, %c0_8] : memref<2x2xf32, #tpu.memory_space<vmem>>, vector<2x2xf32>
    tpu.vector_store %arg3[%c0_7, %c0_8], %8 {strides = array<i32>} : memref<2x2xf32, #tpu.memory_space<vmem>>, vector<2x2xf32>,
    %c0_9 = arith.constant 0 : index
    %c0_10 = arith.constant 0 : index
    %10 = vector.load %arg4[%c0_9, %c0_10] : memref<2x2xf32, #tpu.memory_space<vmem>>, vector<2x2xf32>
    %11 = arith.addf %10, %6 : vector<2x2xf32>
    %c0_11 = arith.constant 0 : index
    %c0_12 = arith.constant 0 : index
    %12 = vector.load %arg4[%c0_11, %c0_12] : memref<2x2xf32, #tpu.memory_space<vmem>>, vector<2x2xf32>
    tpu.vector_store %arg4[%c0_11, %c0_12], %11 {strides = array<i32>} : memref<2x2xf32, #tpu.memory_space<vmem>>, vector<2x2xf32>,
    return
  }
  func.func @transform_0(%arg0: i32) -> (i32, i32) {
    %c0_i32 = arith.constant 0 : i32
    %0 = arith.minsi %arg0, %c0_i32 : i32
    %c0_i32_0 = arith.constant 0 : i32
    %c0_i32_1 = arith.constant 0 : i32
    return %c0_i32_0, %0 : i32, i32
  }
  func.func @transform_1(%arg0: i32) -> (i32, i32) {
    %c0_i32 = arith.constant 0 : i32
    %0 = arith.minsi %arg0, %c0_i32 : i32
    %c0_i32_0 = arith.constant 0 : i32
    %c0_i32_1 = arith.constant 0 : i32
    return %c0_i32_0, %0 : i32, i32
  }
  func.func @transform_2(%arg0: i32) -> (i32, i32) {
    %c0_i32 = arith.constant 0 : i32
    %c0_i32_0 = arith.constant 0 : i32
    %c0_i32_1 = arith.constant 0 : i32
    return %c0_i32, %c0_i32_0 : i32, i32
  }
  func.func @transform_3(%arg0: i32) -> (i32, i32) {
    %c0_i32 = arith.constant 0 : i32
    %c0_i32_0 = arith.constant 0 : i32
    %c0_i32_1 = arith.constant 0 : i32
    return %c0_i32, %c0_i32_0 : i32, i32
  }
}

</mosaic_0001>

<llo_original>
// kernel: sp_loss.1
$region0: #{sp_loss.1}
  #allocation0 [shape = 'u32[]', space=smem, size = 0x4, offset = 0x4, fixed_abs, tag = 'smem constant byte address 0x4 - core index']
  #allocation1 [shape = 'u32[72,128]{1,0:T(1,128)}', space=vmem, size = 0x9000, scoped, tag = 'internal scratch']
  %s0 = inlined_call_operand.vmem [shape: f32[2,1024], index: 0, kind: input, shape index: {}]
  %s1 = inlined_call_operand.vmem [shape: f32[2,1024], index: 1, kind: input, shape index: {}]
  %s2 = inlined_call_operand.vmem [shape: f32[2,2], index: 2, kind: output, shape index: {0}]
  %s3 = inlined_call_operand.vmem [shape: f32[2,2], index: 3, kind: output, shape index: {1}]
  %4 = xla_tuple %s2, %s3
  %s5 = sld [smem:[#allocation0]]
  $region30: #{sp_loss.1} parent=0
    _
  %s7 = ssub.s32 1, %s5
  %s8 = scalar_select 0, %s7, %s5
  // Predicated region
  $region2: #{sp_loss.1} parent=0 // pred_check
    _
  $region3: #{sp_loss.1} parent=0 // pred_check_branch
    %10 = sbr.rel (0) target = $region5
  $region4: #{sp_loss.1} parent=0 // pred_region
    _
  $region5: #{sp_loss.1} parent=0 // pred_fallthru
    _
  // Predicated region
  $region6: #{sp_loss.1} parent=0 // pred_check
    _
  $region7: #{sp_loss.1} parent=0 // pred_check_branch
    %12 = sbr.rel (0) target = $region9
  $region8: #{sp_loss.1} parent=0 // pred_region
    _
  $region9: #{sp_loss.1} parent=0 // pred_fallthru
    _
  %p13 = scmp.eq.s32.totalorder 0, 0
  // Predicated region
  $region10: #{sp_loss.1} parent=0 // pred_check
    %p14 = pneg %p13
  $region11: #{sp_loss.1} parent=0 // pred_check_branch
    %16 = sbr.rel (%p14) target = $region13
  $region12: #{sp_loss.1} parent=0 // pred_region
    %vm17 = vcmask 9216
    %18 = vst.msk [vmem:[%s2] sm:$0x3] %vm17, 0.0
    %19 = vst.msk [vmem:[%s3] sm:$0x3] %vm17, 0.0
  $region13: #{sp_loss.1} parent=0 // pred_fallthru
    _
  %v20 = vld [vmem:[%s0] sm:$0xff]
  %v21 = vld [vmem:[%s0 + $0x8] sm:$0xff]
  %v22 = vld [vmem:[%s1] sm:$0xff]
  %v23 = vld [vmem:[%s1 + $0x8] sm:$0xff]
  %26 = vst [vmem:[#allocation1] ss:$4 sm:$0xff] %v20
  %s27 = scalar_lea.vmem [#allocation1], 32
  %28 = vst [vmem:[%s27] ss:$4 sm:$0xff] %v21
  %v29 = vld.sshfl [vmem:[#allocation1] sm:$0xff pattern:$0x73625140]
  %v30 = vld.sshfl [vmem:[#allocation1 + $0x8] sm:$0xff pattern:$0x73625140]
  %v31 = vld.sshfl [vmem:[#allocation1 + $0x10] sm:$0xff pattern:$0x73625140]
  %v32 = vld.sshfl [vmem:[#allocation1 + $0x18] sm:$0xff pattern:$0x73625140]
  %v33 = vld.sshfl [vmem:[#allocation1 + $0x20] sm:$0xff pattern:$0x73625140]
  %v34 = vld.sshfl [vmem:[#allocation1 + $0x28] sm:$0xff pattern:$0x73625140]
  %v35 = vld.sshfl [vmem:[#allocation1 + $0x30] sm:$0xff pattern:$0x73625140]
  %v36 = vld.sshfl [vmem:[#allocation1 + $0x38] sm:$0xff pattern:$0x73625140]
  %45 = vst [vmem:[#allocation1] ss:$4 sm:$0xff] %v20
  %s46 = scalar_lea.vmem [#allocation1], 32
  %47 = vst [vmem:[%s46] ss:$4 sm:$0xff] %v21
  %v48 = vld.sshfl [vmem:[#allocation1] sm:$0xff pattern:$0x73625140]
  %v49 = vld.sshfl [vmem:[#allocation1 + $0x8] sm:$0xff pattern:$0x73625140]
  %v50 = vld.sshfl [vmem:[#allocation1 + $0x10] sm:$0xff pattern:$0x73625140]
  %v51 = vld.sshfl [vmem:[#allocation1 + $0x18] sm:$0xff pattern:$0x73625140]
  %v52 = vld.sshfl [vmem:[#allocation1 + $0x20] sm:$0xff pattern:$0x73625140]
  %v53 = vld.sshfl [vmem:[#allocation1 + $0x28] sm:$0xff pattern:$0x73625140]
  %v54 = vld.sshfl [vmem:[#allocation1 + $0x30] sm:$0xff pattern:$0x73625140]
  %v55 = vld.sshfl [vmem:[#allocation1 + $0x38] sm:$0xff pattern:$0x73625140]
  %64 = vmatpush.xpose.msra.mxu0 0.0
  %65 = vmatpush.xpose.msra.mxu0 0.0
  %66 = vmatpush.xpose.msra.mxu0 0.0
  %67 = vmatpush.xpose.msra.mxu0 0.0
  %68 = vmatpush.xpose.msra.mxu0 0.0
  %69 = vmatpush.xpose.msra.mxu0 0.0
  %70 = vmatpush.xpose.msra.mxu0 0.0
  %71 = vmatpush.xpose.msra.mxu0 0.0
  %72 = vmatpush.xpose.msra.mxu0 0.0
  %73 = vmatpush.xpose.msra.mxu0 0.0
  %74 = vmatpush.xpose.msra.mxu0 0.0
  %75 = vmatpush.xpose.msra.mxu0 0.0
  %76 = vmatpush.xpose.msra.mxu0 0.0
  %77 = vmatpush.xpose.msra.mxu0 0.0
  %78 = vmatpush.xpose.msra.mxu0 0.0
  %79 = vmatpush.xpose.msra.mxu0 %v48
  %80 = vmatmul.f32.gmra.mxu0 %v29
  %v81 = vpop.f32.mrf.mxu0
  %v82 = vadd.f32 0.0, %v81
  %83 = vdwg.mxu0
  %84 = vmatpush.xpose.msra.mxu0 0.0
  %85 = vmatpush.xpose.msra.mxu0 0.0
  %86 = vmatpush.xpose.msra.mxu0 0.0
  %87 = vmatpush.xpose.msra.mxu0 0.0
  %88 = vmatpush.xpose.msra.mxu0 0.0
  %89 = vmatpush.xpose.msra.mxu0 0.0
  %90 = vmatpush.xpose.msra.mxu0 0.0
  %91 = vmatpush.xpose.msra.mxu0 0.0
  %92 = vmatpush.xpose.msra.mxu0 0.0
  %93 = vmatpush.xpose.msra.mxu0 0.0
  %94 = vmatpush.xpose.msra.mxu0 0.0
  %95 = vmatpush.xpose.msra.mxu0 0.0
  %96 = vmatpush.xpose.msra.mxu0 0.0
  %97 = vmatpush.xpose.msra.mxu0 0.0
  %98 = vmatpush.xpose.msra.mxu0 0.0
  %99 = vmatpush.xpose.msra.mxu0 %v49
  %100 = vmatmul.f32.gmra.mxu0 %v30
  %v101 = vpop.f32.mrf.mxu0
  %v102 = vadd.f32 %v82, %v101
  %103 = vdwg.mxu0
  %104 = vmatpush.xpose.msra.mxu0 0.0
  %105 = vmatpush.xpose.msra.mxu0 0.0
  %106 = vmatpush.xpose.msra.mxu0 0.0
  %107 = vmatpush.xpose.msra.mxu0 0.0
  %108 = vmatpush.xpose.msra.mxu0 0.0
  %109 = vmatpush.xpose.msra.mxu0 0.0
  %110 = vmatpush.xpose.msra.mxu0 0.0
  %111 = vmatpush.xpose.msra.mxu0 0.0
  %112 = vmatpush.xpose.msra.mxu0 0.0
  %113 = vmatpush.xpose.msra.mxu0 0.0
  %114 = vmatpush.xpose.msra.mxu0 0.0
  %115 = vmatpush.xpose.msra.mxu0 0.0
  %116 = vmatpush.xpose.msra.mxu0 0.0
  %117 = vmatpush.xpose.msra.mxu0 0.0
  %118 = vmatpush.xpose.msra.mxu0 0.0
  %119 = vmatpush.xpose.msra.mxu0 %v50
  %120 = vmatmul.f32.gmra.mxu0 %v31
  %v121 = vpop.f32.mrf.mxu0
  %v122 = vadd.f32 %v102, %v121
  %123 = vdwg.mxu0
  %124 = vmatpush.xpose.msra.mxu0 0.0
  %125 = vmatpush.xpose.msra.mxu0 0.0
  %126 = vmatpush.xpose.msra.mxu0 0.0
  %127 = vmatpush.xpose.msra.mxu0 0.0
  %128 = vmatpush.xpose.msra.mxu0 0.0
  %129 = vmatpush.xpose.msra.mxu0 0.0
  %130 = vmatpush.xpose.msra.mxu0 0.0
  %131 = vmatpush.xpose.msra.mxu0 0.0
  %132 = vmatpush.xpose.msra.mxu0 0.0
  %133 = vmatpush.xpose.msra.mxu0 0.0
  %134 = vmatpush.xpose.msra.mxu0 0.0
  %135 = vmatpush.xpose.msra.mxu0 0.0
  %136 = vmatpush.xpose.msra.mxu0 0.0
  %137 = vmatpush.xpose.msra.mxu0 0.0
  %138 = vmatpush.xpose.msra.mxu0 0.0
  %139 = vmatpush.xpose.msra.mxu0 %v51
  %140 = vmatmul.f32.gmra.mxu0 %v32
  %v141 = vpop.f32.mrf.mxu0
  %v142 = vadd.f32 %v122, %v141
  %143 = vdwg.mxu0
  %144 = vmatpush.xpose.msra.mxu0 0.0
  %145 = vmatpush.xpose.msra.mxu0 0.0
  %146 = vmatpush.xpose.msra.mxu0 0.0
  %147 = vmatpush.xpose.msra.mxu0 0.0
  %148 = vmatpush.xpose.msra.mxu0 0.0
  %149 = vmatpush.xpose.msra.mxu0 0.0
  %150 = vmatpush.xpose.msra.mxu0 0.0
  %151 = vmatpush.xpose.msra.mxu0 0.0
  %152 = vmatpush.xpose.msra.mxu0 0.0
  %153 = vmatpush.xpose.msra.mxu0 0.0
  %154 = vmatpush.xpose.msra.mxu0 0.0
  %155 = vmatpush.xpose.msra.mxu0 0.0
  %156 = vmatpush.xpose.msra.mxu0 0.0
  %157 = vmatpush.xpose.msra.mxu0 0.0
  %158 = vmatpush.xpose.msra.mxu0 0.0
  %159 = vmatpush.xpose.msra.mxu0 %v52
  %160 = vmatmul.f32.gmra.mxu0 %v33
  %v161 = vpop.f32.mrf.mxu0
  %v162 = vadd.f32 %v142, %v161
  %163 = vdwg.mxu0
  %164 = vmatpush.xpose.msra.mxu0 0.0
  %165 = vmatpush.xpose.msra.mxu0 0.0
  %166 = vmatpush.xpose.msra.mxu0 0.0
  %167 = vmatpush.xpose.msra.mxu0 0.0
  %168 = vmatpush.xpose.msra.mxu0 0.0
  %169 = vmatpush.xpose.msra.mxu0 0.0
  %170 = vmatpush.xpose.msra.mxu0 0.0
  %171 = vmatpush.xpose.msra.mxu0 0.0
  %172 = vmatpush.xpose.msra.mxu0 0.0
  %173 = vmatpush.xpose.msra.mxu0 0.0
  %174 = vmatpush.xpose.msra.mxu0 0.0
  %175 = vmatpush.xpose.msra.mxu0 0.0
  %176 = vmatpush.xpose.msra.mxu0 0.0
  %177 = vmatpush.xpose.msra.mxu0 0.0
  %178 = vmatpush.xpose.msra.mxu0 0.0
  %179 = vmatpush.xpose.msra.mxu0 %v53
  %180 = vmatmul.f32.gmra.mxu0 %v34
  %v181 = vpop.f32.mrf.mxu0
  %v182 = vadd.f32 %v162, %v181
  %183 = vdwg.mxu0
  %184 = vmatpush.xpose.msra.mxu0 0.0
  %185 = vmatpush.xpose.msra.mxu0 0.0
  %186 = vmatpush.xpose.msra.mxu0 0.0
  %187 = vmatpush.xpose.msra.mxu0 0.0
  %188 = vmatpush.xpose.msra.mxu0 0.0
  %189 = vmatpush.xpose.msra.mxu0 0.0
  %190 = vmatpush.xpose.msra.mxu0 0.0
  %191 = vmatpush.xpose.msra.mxu0 0.0
  %192 = vmatpush.xpose.msra.mxu0 0.0
  %193 = vmatpush.xpose.msra.mxu0 0.0
  %194 = vmatpush.xpose.msra.mxu0 0.0
  %195 = vmatpush.xpose.msra.mxu0 0.0
  %196 = vmatpush.xpose.msra.mxu0 0.0
  %197 = vmatpush.xpose.msra.mxu0 0.0
  %198 = vmatpush.xpose.msra.mxu0 0.0
  %199 = vmatpush.xpose.msra.mxu0 %v54
  %200 = vmatmul.f32.gmra.mxu0 %v35
  %v201 = vpop.f32.mrf.mxu0
  %v202 = vadd.f32 %v182, %v201
  %203 = vdwg.mxu0
  %204 = vmatpush.xpose.msra.mxu0 0.0
  %205 = vmatpush.xpose.msra.mxu0 0.0
  %206 = vmatpush.xpose.msra.mxu0 0.0
  %207 = vmatpush.xpose.msra.mxu0 0.0
  %208 = vmatpush.xpose.msra.mxu0 0.0
  %209 = vmatpush.xpose.msra.mxu0 0.0
  %210 = vmatpush.xpose.msra.mxu0 0.0
  %211 = vmatpush.xpose.msra.mxu0 0.0
  %212 = vmatpush.xpose.msra.mxu0 0.0
  %213 = vmatpush.xpose.msra.mxu0 0.0
  %214 = vmatpush.xpose.msra.mxu0 0.0
  %215 = vmatpush.xpose.msra.mxu0 0.0
  %216 = vmatpush.xpose.msra.mxu0 0.0
  %217 = vmatpush.xpose.msra.mxu0 0.0
  %218 = vmatpush.xpose.msra.mxu0 0.0
  %219 = vmatpush.xpose.msra.mxu0 %v55
  %220 = vmatmul.f32.gmra.mxu0 %v36
  %v221 = vpop.f32.mrf.mxu0
  %v222 = vadd.f32 %v202, %v221
  %223 = vdwg.mxu0
  %226 = vst [vmem:[#allocation1] ss:$4 sm:$0xff] %v22
  %s227 = scalar_lea.vmem [#allocation1], 32
  %228 = vst [vmem:[%s227] ss:$4 sm:$0xff] %v23
  %v229 = vld.sshfl [vmem:[#allocation1] sm:$0xff pattern:$0x73625140]
  %v230 = vld.sshfl [vmem:[#allocation1 + $0x8] sm:$0xff pattern:$0x73625140]
  %v231 = vld.sshfl [vmem:[#allocation1 + $0x10] sm:$0xff pattern:$0x73625140]
  %v232 = vld.sshfl [vmem:[#allocation1 + $0x18] sm:$0xff pattern:$0x73625140]
  %v233 = vld.sshfl [vmem:[#allocation1 + $0x20] sm:$0xff pattern:$0x73625140]
  %v234 = vld.sshfl [vmem:[#allocation1 + $0x28] sm:$0xff pattern:$0x73625140]
  %v235 = vld.sshfl [vmem:[#allocation1 + $0x30] sm:$0xff pattern:$0x73625140]
  %v236 = vld.sshfl [vmem:[#allocation1 + $0x38] sm:$0xff pattern:$0x73625140]
  %245 = vst [vmem:[#allocation1] ss:$4 sm:$0xff] %v22
  %s246 = scalar_lea.vmem [#allocation1], 32
  %247 = vst [vmem:[%s246] ss:$4 sm:$0xff] %v23
  %v248 = vld.sshfl [vmem:[#allocation1] sm:$0xff pattern:$0x73625140]
  %v249 = vld.sshfl [vmem:[#allocation1 + $0x8] sm:$0xff pattern:$0x73625140]
  %v250 = vld.sshfl [vmem:[#allocation1 + $0x10] sm:$0xff pattern:$0x73625140]
  %v251 = vld.sshfl [vmem:[#allocation1 + $0x18] sm:$0xff pattern:$0x73625140]
  %v252 = vld.sshfl [vmem:[#allocation1 + $0x20] sm:$0xff pattern:$0x73625140]
  %v253 = vld.sshfl [vmem:[#allocation1 + $0x28] sm:$0xff pattern:$0x73625140]
  %v254 = vld.sshfl [vmem:[#allocation1 + $0x30] sm:$0xff pattern:$0x73625140]
  %v255 = vld.sshfl [vmem:[#allocation1 + $0x38] sm:$0xff pattern:$0x73625140]
  %264 = vmatpush.xpose.msra.mxu0 0.0
  %265 = vmatpush.xpose.msra.mxu0 0.0
  %266 = vmatpush.xpose.msra.mxu0 0.0
  %267 = vmatpush.xpose.msra.mxu0 0.0
  %268 = vmatpush.xpose.msra.mxu0 0.0
  %269 = vmatpush.xpose.msra.mxu0 0.0
  %270 = vmatpush.xpose.msra.mxu0 0.0
  %271 = vmatpush.xpose.msra.mxu0 0.0
  %272 = vmatpush.xpose.msra.mxu0 0.0
  %273 = vmatpush.xpose.msra.mxu0 0.0
  %274 = vmatpush.xpose.msra.mxu0 0.0
  %275 = vmatpush.xpose.msra.mxu0 0.0
  %276 = vmatpush.xpose.msra.mxu0 0.0
  %277 = vmatpush.xpose.msra.mxu0 0.0
  %278 = vmatpush.xpose.msra.mxu0 0.0
  %279 = vmatpush.xpose.msra.mxu0 %v248
  %280 = vmatmul.f32.gmra.mxu0 %v229
  %v281 = vpop.f32.mrf.mxu0
  %v282 = vadd.f32 0.0, %v281
  %283 = vdwg.mxu0
  %284 = vmatpush.xpose.msra.mxu0 0.0
  %285 = vmatpush.xpose.msra.mxu0 0.0
  %286 = vmatpush.xpose.msra.mxu0 0.0
  %287 = vmatpush.xpose.msra.mxu0 0.0
  %288 = vmatpush.xpose.msra.mxu0 0.0
  %289 = vmatpush.xpose.msra.mxu0 0.0
  %290 = vmatpush.xpose.msra.mxu0 0.0
  %291 = vmatpush.xpose.msra.mxu0 0.0
  %292 = vmatpush.xpose.msra.mxu0 0.0
  %293 = vmatpush.xpose.msra.mxu0 0.0
  %294 = vmatpush.xpose.msra.mxu0 0.0
  %295 = vmatpush.xpose.msra.mxu0 0.0
  %296 = vmatpush.xpose.msra.mxu0 0.0
  %297 = vmatpush.xpose.msra.mxu0 0.0
  %298 = vmatpush.xpose.msra.mxu0 0.0
  %299 = vmatpush.xpose.msra.mxu0 %v249
  %300 = vmatmul.f32.gmra.mxu0 %v230
  %v301 = vpop.f32.mrf.mxu0
  %v302 = vadd.f32 %v282, %v301
  %303 = vdwg.mxu0
  %304 = vmatpush.xpose.msra.mxu0 0.0
  %305 = vmatpush.xpose.msra.mxu0 0.0
  %306 = vmatpush.xpose.msra.mxu0 0.0
  %307 = vmatpush.xpose.msra.mxu0 0.0
  %308 = vmatpush.xpose.msra.mxu0 0.0
  %309 = vmatpush.xpose.msra.mxu0 0.0
  %310 = vmatpush.xpose.msra.mxu0 0.0
  %311 = vmatpush.xpose.msra.mxu0 0.0
  %312 = vmatpush.xpose.msra.mxu0 0.0
  %313 = vmatpush.xpose.msra.mxu0 0.0
  %314 = vmatpush.xpose.msra.mxu0 0.0
  %315 = vmatpush.xpose.msra.mxu0 0.0
  %316 = vmatpush.xpose.msra.mxu0 0.0
  %317 = vmatpush.xpose.msra.mxu0 0.0
  %318 = vmatpush.xpose.msra.mxu0 0.0
  %319 = vmatpush.xpose.msra.mxu0 %v250
  %320 = vmatmul.f32.gmra.mxu0 %v231
  %v321 = vpop.f32.mrf.mxu0
  %v322 = vadd.f32 %v302, %v321
  %323 = vdwg.mxu0
  %324 = vmatpush.xpose.msra.mxu0 0.0
  %325 = vmatpush.xpose.msra.mxu0 0.0
  %326 = vmatpush.xpose.msra.mxu0 0.0
  %327 = vmatpush.xpose.msra.mxu0 0.0
  %328 = vmatpush.xpose.msra.mxu0 0.0
  %329 = vmatpush.xpose.msra.mxu0 0.0
  %330 = vmatpush.xpose.msra.mxu0 0.0
  %331 = vmatpush.xpose.msra.mxu0 0.0
  %332 = vmatpush.xpose.msra.mxu0 0.0
  %333 = vmatpush.xpose.msra.mxu0 0.0
  %334 = vmatpush.xpose.msra.mxu0 0.0
  %335 = vmatpush.xpose.msra.mxu0 0.0
  %336 = vmatpush.xpose.msra.mxu0 0.0
  %337 = vmatpush.xpose.msra.mxu0 0.0
  %338 = vmatpush.xpose.msra.mxu0 0.0
  %339 = vmatpush.xpose.msra.mxu0 %v251
  %340 = vmatmul.f32.gmra.mxu0 %v232
  %v341 = vpop.f32.mrf.mxu0
  %v342 = vadd.f32 %v322, %v341
  %343 = vdwg.mxu0
  %344 = vmatpush.xpose.msra.mxu0 0.0
  %345 = vmatpush.xpose.msra.mxu0 0.0
  %346 = vmatpush.xpose.msra.mxu0 0.0
  %347 = vmatpush.xpose.msra.mxu0 0.0
  %348 = vmatpush.xpose.msra.mxu0 0.0
  %349 = vmatpush.xpose.msra.mxu0 0.0
  %350 = vmatpush.xpose.msra.mxu0 0.0
  %351 = vmatpush.xpose.msra.mxu0 0.0
  %352 = vmatpush.xpose.msra.mxu0 0.0
  %353 = vmatpush.xpose.msra.mxu0 0.0
  %354 = vmatpush.xpose.msra.mxu0 0.0
  %355 = vmatpush.xpose.msra.mxu0 0.0
  %356 = vmatpush.xpose.msra.mxu0 0.0
  %357 = vmatpush.xpose.msra.mxu0 0.0
  %358 = vmatpush.xpose.msra.mxu0 0.0
  %359 = vmatpush.xpose.msra.mxu0 %v252
  %360 = vmatmul.f32.gmra.mxu0 %v233
  %v361 = vpop.f32.mrf.mxu0
  %v362 = vadd.f32 %v342, %v361
  %363 = vdwg.mxu0
  %364 = vmatpush.xpose.msra.mxu0 0.0
  %365 = vmatpush.xpose.msra.mxu0 0.0
  %366 = vmatpush.xpose.msra.mxu0 0.0
  %367 = vmatpush.xpose.msra.mxu0 0.0
  %368 = vmatpush.xpose.msra.mxu0 0.0
  %369 = vmatpush.xpose.msra.mxu0 0.0
  %370 = vmatpush.xpose.msra.mxu0 0.0
  %371 = vmatpush.xpose.msra.mxu0 0.0
  %372 = vmatpush.xpose.msra.mxu0 0.0
  %373 = vmatpush.xpose.msra.mxu0 0.0
  %374 = vmatpush.xpose.msra.mxu0 0.0
  %375 = vmatpush.xpose.msra.mxu0 0.0
  %376 = vmatpush.xpose.msra.mxu0 0.0
  %377 = vmatpush.xpose.msra.mxu0 0.0
  %378 = vmatpush.xpose.msra.mxu0 0.0
  %379 = vmatpush.xpose.msra.mxu0 %v253
  %380 = vmatmul.f32.gmra.mxu0 %v234
  %v381 = vpop.f32.mrf.mxu0
  %v382 = vadd.f32 %v362, %v381
  %383 = vdwg.mxu0
  %384 = vmatpush.xpose.msra.mxu0 0.0
  %385 = vmatpush.xpose.msra.mxu0 0.0
  %386 = vmatpush.xpose.msra.mxu0 0.0
  %387 = vmatpush.xpose.msra.mxu0 0.0
  %388 = vmatpush.xpose.msra.mxu0 0.0
  %389 = vmatpush.xpose.msra.mxu0 0.0
  %390 = vmatpush.xpose.msra.mxu0 0.0
  %391 = vmatpush.xpose.msra.mxu0 0.0
  %392 = vmatpush.xpose.msra.mxu0 0.0
  %393 = vmatpush.xpose.msra.mxu0 0.0
  %394 = vmatpush.xpose.msra.mxu0 0.0
  %395 = vmatpush.xpose.msra.mxu0 0.0
  %396 = vmatpush.xpose.msra.mxu0 0.0
  %397 = vmatpush.xpose.msra.mxu0 0.0
  %398 = vmatpush.xpose.msra.mxu0 0.0
  %399 = vmatpush.xpose.msra.mxu0 %v254
  %400 = vmatmul.f32.gmra.mxu0 %v235
  %v401 = vpop.f32.mrf.mxu0
  %v402 = vadd.f32 %v382, %v401
  %403 = vdwg.mxu0
  %404 = vmatpush.xpose.msra.mxu0 0.0
  %405 = vmatpush.xpose.msra.mxu0 0.0
  %406 = vmatpush.xpose.msra.mxu0 0.0
  %407 = vmatpush.xpose.msra.mxu0 0.0
  %408 = vmatpush.xpose.msra.mxu0 0.0
  %409 = vmatpush.xpose.msra.mxu0 0.0
  %410 = vmatpush.xpose.msra.mxu0 0.0
  %411 = vmatpush.xpose.msra.mxu0 0.0
  %412 = vmatpush.xpose.msra.mxu0 0.0
  %413 = vmatpush.xpose.msra.mxu0 0.0
  %414 = vmatpush.xpose.msra.mxu0 0.0
  %415 = vmatpush.xpose.msra.mxu0 0.0
  %416 = vmatpush.xpose.msra.mxu0 0.0
  %417 = vmatpush.xpose.msra.mxu0 0.0
  %418 = vmatpush.xpose.msra.mxu0 0.0
  %419 = vmatpush.xpose.msra.mxu0 %v255
  %420 = vmatmul.f32.gmra.mxu0 %v236
  %v421 = vpop.f32.mrf.mxu0
  %v422 = vadd.f32 %v402, %v421
  %423 = vdwg.mxu0
  %v424 = vld [vmem:[%s2] sm:$0x3]
  %v425 = vadd.f32 %v424, %v222
  %vm426 = vcmask 9216
  %427 = vst.msk [vmem:[%s2] sm:$0x3] %vm426, %v425
  %v428 = vld [vmem:[%s3] sm:$0x3]
  %v429 = vadd.f32 %v428, %v422
  %430 = vst.msk [vmem:[%s3] sm:$0x3] %vm426, %v429
  // Predicated region
  $region14: #{sp_loss.1} parent=0 // pred_check
    _
  $region15: #{sp_loss.1} parent=0 // pred_check_branch
    %432 = sbr.rel (0) target = $region17
  $region16: #{sp_loss.1} parent=0 // pred_region
    _
  $region17: #{sp_loss.1} parent=0 // pred_fallthru
    _
  // Predicated region
  $region18: #{sp_loss.1} parent=0 // pred_check
    _
  $region19: #{sp_loss.1} parent=0 // pred_check_branch
    %434 = sbr.rel (0) target = $region21
  $region20: #{sp_loss.1} parent=0 // pred_region
    _
  $region21: #{sp_loss.1} parent=0 // pred_fallthru
    _
  // Predicated region
  $region22: #{sp_loss.1} parent=0 // pred_check
    _
  $region23: #{sp_loss.1} parent=0 // pred_check_branch
    %436 = sbr.rel (0) target = $region25
  $region24: #{sp_loss.1} parent=0 // pred_region
    _
  $region25: #{sp_loss.1} parent=0 // pred_fallthru
    _
  // Predicated region
  $region26: #{sp_loss.1} parent=0 // pred_check
    _
  $region27: #{sp_loss.1} parent=0 // pred_check_branch
    %438 = sbr.rel (0) target = $region29
  $region28: #{sp_loss.1} parent=0 // pred_region
    _
  $region29: #{sp_loss.1} parent=0 // pred_fallthru
    _

</llo_original>
